<compile_context>
chip_gen: v7x
topology: tpu7x:2x2x1
jax: 0.10.0
libtpu: 0.0.40
codegen_flags: <defaults>
</compile_context>

<pallas_src>
import functools

import jax
import jax.numpy as jnp
from jax import lax
from jax.experimental import pallas as pl
from jax.experimental.pallas import tpu as pltpu

H1, H2, H3 = 16, 10, 8            # fc1 -> 16, fc2 -> 10, fc3 -> 8 (module spec)
_LANE = 128                        # TPU lane width
_VMEM_X_BUDGET = 8 * 1024 * 1024   # bytes for the double-buffered x block


def _cdiv(a, b):
    return -(-a // b)


def _round_up(a, m):
    return _cdiv(a, m) * m


def _mlp_kernel(x_ref, w1_ref, b1_ref, w2_ref, b2_ref, w3_ref, b3_ref, o_ref):
    # All activations are kept transposed: [features (sublanes), batch (lanes)].
    # Layer 1: h1T[o, n] = sum_d W1[o, d] * x[n, d]  -- same contraction pattern
    # as q @ k.T in flash attention (MXU handles the RHS transpose natively).
    h = lax.dot_general(
        w1_ref[...], x_ref[...],
        dimension_numbers=(((1,), (1,)), ((), ())),
        preferred_element_type=jnp.float32)
    h = jnp.maximum(h + b1_ref[...], 0.0)                 # (16, tile)

    # Layers 2/3: plain (out, in) @ (in, batch) matmuls, batch stays on lanes.
    h = jnp.dot(w2_ref[...], h, preferred_element_type=jnp.float32)
    h = jnp.maximum(h + b2_ref[...], 0.0)                 # (10, tile)

    h = jnp.dot(w3_ref[...], h, preferred_element_type=jnp.float32)
    o_ref[...] = jnp.maximum(h + b3_ref[...], 0.0)        # (8, tile) lane-dense


def _pick_batch_tile(b, d_in, requested):
    """Static (trace-time) batch-tile selection. Always a multiple of 128."""
    requested = max(_LANE, (requested // _LANE) * _LANE)
    # Keep 2 * tile * d_in * 4 bytes (double-buffered x block) under budget so
    # the kernel fits v7x's smaller VMEM without relying on defaults.
    vmem_cap = max(_LANE, (_VMEM_X_BUDGET // (2 * 4 * max(d_in, 1))) // _LANE * _LANE)
    tile = min(requested, vmem_cap, _round_up(b, _LANE))
    tile = max(tile, _LANE)
    # Prefer >= 2 grid tiles so both v7x TensorCores get work (no-op on v5e/v6e).
    if b > _LANE and _cdiv(b, tile) < 2:
        tile = max(_LANE, _round_up(_cdiv(b, 2), _LANE))
    return tile


@functools.partial(jax.jit, static_argnames=("batch_tile",))
def query_encoder_forward(x, params, batch_tile=512):
    """x: [B, input_size] float32; params in PyTorch layout. Returns [B, 8]."""
    w1, b1, w2, b2, w3, b3 = params
    b, d_in = x.shape

    tile = _pick_batch_tile(b, d_in, batch_tile)
    grid = (_cdiv(b, tile),)

    out_t = pl.pallas_call(
        _mlp_kernel,
        out_shape=jax.ShapeDtypeStruct((H3, b), jnp.float32),
        grid_spec=pltpu.PrefetchScalarGridSpec(
            num_scalar_prefetch=0,
            grid=grid,
            in_specs=[
                pl.BlockSpec((tile, d_in), lambda i: (i, 0)),   # x batch tile
                pl.BlockSpec((H1, d_in), lambda i: (0, 0)),     # W1 (resident)
                pl.BlockSpec((H1, 1), lambda i: (0, 0)),        # b1
                pl.BlockSpec((H2, H1), lambda i: (0, 0)),       # W2
                pl.BlockSpec((H2, 1), lambda i: (0, 0)),        # b2
                pl.BlockSpec((H3, H2), lambda i: (0, 0)),       # W3
                pl.BlockSpec((H3, 1), lambda i: (0, 0)),        # b3
            ],
            out_specs=pl.BlockSpec((H3, tile), lambda i: (0, i)),
        ),
        compiler_params=pltpu.CompilerParams(
            dimension_semantics=("parallel",),
            vmem_limit_bytes=32 * 1024 * 1024,
        ),
    )(x, w1, b1, w2, b2, w3, b3)

    # Tiny layout-plumbing transpose back to the module's [B, 8] output.
    return out_t.T


def init_params(key, input_size):
    """Deterministic synthetic parameters in PyTorch nn.Linear layout."""
    k1, k2, k3, k4, k5, k6 = jax.random.split(key, 6)
    w1 = jax.random.normal(k1, (H1, input_size), jnp.float32) * 0.1  # [out, in]
    b1 = jax.random.normal(k2, (H1, 1), jnp.float32) * 0.1           # [out, 1]
    w2 = jax.random.normal(k3, (H2, H1), jnp.float32) * 0.1
    b2 = jax.random.normal(k4, (H2, 1), jnp.float32) * 0.1
    w3 = jax.random.normal(k5, (H3, H2), jnp.float32) * 0.1
    b3 = jax.random.normal(k6, (H3, 1), jnp.float32) * 0.1
    return (w1, b1, w2, b2, w3, b3)


def reference_forward(x, params):
    """Pure-JAX reference matching PyTorch: y = relu(x @ W.T + b) three times."""
    w1, b1, w2, b2, w3, b3 = params
    h = jnp.maximum(jnp.dot(x, w1.T, precision="highest") + b1[:, 0], 0.0)
    h = jnp.maximum(jnp.dot(h, w2.T, precision="highest") + b2[:, 0], 0.0)
    return jnp.maximum(jnp.dot(h, w3.T, precision="highest") + b3[:, 0], 0.0)


if __name__ == "__main__":
    key = jax.random.PRNGKey(0)
    kx, kp, kx2 = jax.random.split(key, 3)

    batch, input_size = 2, 32
    x = jax.random.normal(kx, (batch, input_size), jnp.float32)
    params = init_params(kp, input_size)

    out = jax.block_until_ready(query_encoder_forward(x, params))
    ref = reference_forward(x, params)
    assert out.shape == (batch, H3), out.shape
    assert jnp.allclose(out, ref, atol=1e-5, rtol=1e-5), "mismatch vs reference"

    # Also exercise the multi-tile + ragged-last-block path (no pre-padding).
    batch2 = 384
    x2 = jax.random.normal(kx2, (batch2, input_size), jnp.float32)
    out2 = jax.block_until_ready(query_encoder_forward(x2, params))
    ref2 = reference_forward(x2, params)
    assert out2.shape == (batch2, H3), out2.shape
    assert jnp.allclose(out2, ref2, atol=1e-5, rtol=1e-5), "mismatch (ragged)"

    print("KERNEL_OK")
</pallas_src>

<mosaic_0001>
module attributes {stable_mosaic.version = 11 : i64} {
  func.func @_mlp_kernel(%arg0: i32, %arg1: memref<128x32xf32, #tpu.memory_space<vmem>>, %arg2: memref<16x32xf32, #tpu.memory_space<vmem>>, %arg3: memref<16x1xf32, #tpu.memory_space<vmem>>, %arg4: memref<10x16xf32, #tpu.memory_space<vmem>>, %arg5: memref<10x1xf32, #tpu.memory_space<vmem>>, %arg6: memref<8x10xf32, #tpu.memory_space<vmem>>, %arg7: memref<8x1xf32, #tpu.memory_space<vmem>>, %arg8: memref<8x128xf32, #tpu.memory_space<vmem>>) attributes {dimension_semantics = [#tpu.dimension_semantics<parallel>], iteration_bounds = array<i64: 1>, scalar_prefetch = 0 : i64, scratch_operands = 0 : i64, tpu.core_type = #tpu.core_type<tc>, window_params = [{transform_indices = @transform_0, window_bounds = array<i64: 128, 32>}, {pipeline_mode = #tpu.pipeline_mode<synchronous>, transform_indices = @transform_1, window_bounds = array<i64: 16, 32>}, {pipeline_mode = #tpu.pipeline_mode<synchronous>, transform_indices = @transform_2, window_bounds = array<i64: 16, 1>}, {pipeline_mode = #tpu.pipeline_mode<synchronous>, transform_indices = @transform_3, window_bounds = array<i64: 10, 16>}, {pipeline_mode = #tpu.pipeline_mode<synchronous>, transform_indices = @transform_4, window_bounds = array<i64: 10, 1>}, {pipeline_mode = #tpu.pipeline_mode<synchronous>, transform_indices = @transform_5, window_bounds = array<i64: 8, 10>}, {pipeline_mode = #tpu.pipeline_mode<synchronous>, transform_indices = @transform_6, window_bounds = array<i64: 8, 1>}, {transform_indices = @transform_7, window_bounds = array<i64: 8, 128>}]} {
    %c0 = arith.constant 0 : index
    %c0_0 = arith.constant 0 : index
    %0 = vector.load %arg2[%c0, %c0_0] : memref<16x32xf32, #tpu.memory_space<vmem>>, vector<16x32xf32>
    %c0_1 = arith.constant 0 : index
    %c0_2 = arith.constant 0 : index
    %1 = vector.load %arg1[%c0_1, %c0_2] : memref<128x32xf32, #tpu.memory_space<vmem>>, vector<128x32xf32>
    %cst = arith.constant dense<0.000000e+00> : vector<16x128xf32>
    %2 = tpu.matmul %0, %1, %cst {dimension_numbers = #tpu.dot_dimension_numbers<[1], [1], [0], [0], [0, 0, 1, 0], [], []>} : vector<16x32xf32>, vector<128x32xf32>, vector<16x128xf32> -> vector<16x128xf32>
    %c0_3 = arith.constant 0 : index
    %c0_4 = arith.constant 0 : index
    %3 = vector.load %arg3[%c0_3, %c0_4] : memref<16x1xf32, #tpu.memory_space<vmem>>, vector<16x1xf32>
    %4 = vector.broadcast %3 : vector<16x1xf32> to vector<16x128xf32>
    %5 = arith.addf %2, %4 : vector<16x128xf32>
    %cst_5 = arith.constant 0.000000e+00 : f32
    %6 = vector.broadcast %cst_5 : f32 to vector<16x128xf32>
    %7 = arith.maximumf %5, %6 : vector<16x128xf32>
    %c0_6 = arith.constant 0 : index
    %c0_7 = arith.constant 0 : index
    %8 = vector.load %arg4[%c0_6, %c0_7] : memref<10x16xf32, #tpu.memory_space<vmem>>, vector<10x16xf32>
    %cst_8 = arith.constant dense<0.000000e+00> : vector<10x128xf32>
    %9 = tpu.matmul %8, %7, %cst_8 {dimension_numbers = #tpu.dot_dimension_numbers<[1], [0], [0], [1], [0, 0, 1, 1], [], []>} : vector<10x16xf32>, vector<16x128xf32>, vector<10x128xf32> -> vector<10x128xf32>
    %c0_9 = arith.constant 0 : index
    %c0_10 = arith.constant 0 : index
    %10 = vector.load %arg5[%c0_9, %c0_10] : memref<10x1xf32, #tpu.memory_space<vmem>>, vector<10x1xf32>
    %11 = vector.broadcast %10 : vector<10x1xf32> to vector<10x128xf32>
    %12 = arith.addf %9, %11 : vector<10x128xf32>
    %cst_11 = arith.constant 0.000000e+00 : f32
    %13 = vector.broadcast %cst_11 : f32 to vector<10x128xf32>
    %14 = arith.maximumf %12, %13 : vector<10x128xf32>
    %c0_12 = arith.constant 0 : index
    %c0_13 = arith.constant 0 : index
    %15 = vector.load %arg6[%c0_12, %c0_13] : memref<8x10xf32, #tpu.memory_space<vmem>>, vector<8x10xf32>
    %cst_14 = arith.constant dense<0.000000e+00> : vector<8x128xf32>
    %16 = tpu.matmul %15, %14, %cst_14 {dimension_numbers = #tpu.dot_dimension_numbers<[1], [0], [0], [1], [0, 0, 1, 1], [], []>} : vector<8x10xf32>, vector<10x128xf32>, vector<8x128xf32> -> vector<8x128xf32>
    %c0_15 = arith.constant 0 : index
    %c0_16 = arith.constant 0 : index
    %17 = vector.load %arg7[%c0_15, %c0_16] : memref<8x1xf32, #tpu.memory_space<vmem>>, vector<8x1xf32>
    %18 = vector.broadcast %17 : vector<8x1xf32> to vector<8x128xf32>
    %19 = arith.addf %16, %18 : vector<8x128xf32>
    %cst_17 = arith.constant 0.000000e+00 : f32
    %20 = vector.broadcast %cst_17 : f32 to vector<8x128xf32>
    %21 = arith.maximumf %19, %20 : vector<8x128xf32>
    %c0_18 = arith.constant 0 : index
    %c0_19 = arith.constant 0 : index
    %22 = vector.load %arg8[%c0_18, %c0_19] : memref<8x128xf32, #tpu.memory_space<vmem>>, vector<8x128xf32>
    tpu.vector_store %arg8[%c0_18, %c0_19], %21 {strides = array<i32>} : memref<8x128xf32, #tpu.memory_space<vmem>>, vector<8x128xf32>,
    return
  }
  func.func @transform_0(%arg0: i32) -> (i32, i32) {
    %c0_i32 = arith.constant 0 : i32
    %c0_i32_0 = arith.constant 0 : i32
    return %arg0, %c0_i32 : i32, i32
  }
  func.func @transform_1(%arg0: i32) -> (i32, i32) {
    %c0_i32 = arith.constant 0 : i32
    %c0_i32_0 = arith.constant 0 : i32
    %c0_i32_1 = arith.constant 0 : i32
    return %c0_i32, %c0_i32_0 : i32, i32
  }
  func.func @transform_2(%arg0: i32) -> (i32, i32) {
    %c0_i32 = arith.constant 0 : i32
    %c0_i32_0 = arith.constant 0 : i32
    %c0_i32_1 = arith.constant 0 : i32
    return %c0_i32, %c0_i32_0 : i32, i32
  }
  func.func @transform_3(%arg0: i32) -> (i32, i32) {
    %c0_i32 = arith.constant 0 : i32
    %c0_i32_0 = arith.constant 0 : i32
    %c0_i32_1 = arith.constant 0 : i32
    return %c0_i32, %c0_i32_0 : i32, i32
  }
  func.func @transform_4(%arg0: i32) -> (i32, i32) {
    %c0_i32 = arith.constant 0 : i32
    %c0_i32_0 = arith.constant 0 : i32
    %c0_i32_1 = arith.constant 0 : i32
    return %c0_i32, %c0_i32_0 : i32, i32
  }
  func.func @transform_5(%arg0: i32) -> (i32, i32) {
    %c0_i32 = arith.constant 0 : i32
    %c0_i32_0 = arith.constant 0 : i32
    %c0_i32_1 = arith.constant 0 : i32
    return %c0_i32, %c0_i32_0 : i32, i32
  }
  func.func @transform_6(%arg0: i32) -> (i32, i32) {
    %c0_i32 = arith.constant 0 : i32
    %c0_i32_0 = arith.constant 0 : i32
    %c0_i32_1 = arith.constant 0 : i32
    return %c0_i32, %c0_i32_0 : i32, i32
  }
  func.func @transform_7(%arg0: i32) -> (i32, i32) {
    %c0_i32 = arith.constant 0 : i32
    %c0_i32_0 = arith.constant 0 : i32
    return %c0_i32, %arg0 : i32, i32
  }
}

</mosaic_0001>

<llo_original>
// kernel: query_encoder_forward.1
$region0: #{query_encoder_forward.1}
  #allocation0 [shape = 'u32[]', space=smem, size = 0x4, offset = 0x4, fixed_abs, tag = 'smem constant byte address 0x4 - core index']
  #allocation1 [shape = 'u32[144,128]{1,0:T(1,128)}', space=vmem, size = 0x12000, scoped, tag = 'internal scratch']
  %s0 = inlined_call_operand.vmem [shape: f32[2,32], index: 0, kind: input, shape index: {}]
  %s1 = inlined_call_operand.vmem [shape: f32[16,32], index: 1, kind: input, shape index: {}]
  %s2 = inlined_call_operand.vmem [shape: f32[16,1], index: 2, kind: input, shape index: {}]
  %s3 = inlined_call_operand.vmem [shape: f32[10,16], index: 3, kind: input, shape index: {}]
  %s4 = inlined_call_operand.vmem [shape: f32[10,1], index: 4, kind: input, shape index: {}]
  %s5 = inlined_call_operand.vmem [shape: f32[8,10], index: 5, kind: input, shape index: {}]
  %s6 = inlined_call_operand.vmem [shape: f32[8,1], index: 6, kind: input, shape index: {}]
  %s7 = inlined_call_operand.vmem [shape: f32[8,2], index: 7, kind: output, shape index: {}]
  %s8 = sld [smem:[#allocation0]]
  $region38: #{query_encoder_forward.1} parent=0
    _
  %s10 = ssub.s32 1, %s8
  %s11 = scalar_select 0, %s10, %s8
  // Predicated region
  $region2: #{query_encoder_forward.1} parent=0 // pred_check
    _
  $region3: #{query_encoder_forward.1} parent=0 // pred_check_branch
    %13 = sbr.rel (0) target = $region5
  $region4: #{query_encoder_forward.1} parent=0 // pred_region
    _
  $region5: #{query_encoder_forward.1} parent=0 // pred_fallthru
    _
  // Predicated region
  $region6: #{query_encoder_forward.1} parent=0 // pred_check
    _
  $region7: #{query_encoder_forward.1} parent=0 // pred_check_branch
    %15 = sbr.rel (0) target = $region9
  $region8: #{query_encoder_forward.1} parent=0 // pred_region
    _
  $region9: #{query_encoder_forward.1} parent=0 // pred_fallthru
    _
  // Predicated region
  $region10: #{query_encoder_forward.1} parent=0 // pred_check
    _
  $region11: #{query_encoder_forward.1} parent=0 // pred_check_branch
    %17 = sbr.rel (0) target = $region13
  $region12: #{query_encoder_forward.1} parent=0 // pred_region
    _
  $region13: #{query_encoder_forward.1} parent=0 // pred_fallthru
    _
  // Predicated region
  $region14: #{query_encoder_forward.1} parent=0 // pred_check
    _
  $region15: #{query_encoder_forward.1} parent=0 // pred_check_branch
    %19 = sbr.rel (0) target = $region17
  $region16: #{query_encoder_forward.1} parent=0 // pred_region
    _
  $region17: #{query_encoder_forward.1} parent=0 // pred_fallthru
    _
  // Predicated region
  $region18: #{query_encoder_forward.1} parent=0 // pred_check
    _
  $region19: #{query_encoder_forward.1} parent=0 // pred_check_branch
    %21 = sbr.rel (0) target = $region21
  $region20: #{query_encoder_forward.1} parent=0 // pred_region
    _
  $region21: #{query_encoder_forward.1} parent=0 // pred_fallthru
    _
  // Predicated region
  $region22: #{query_encoder_forward.1} parent=0 // pred_check
    _
  $region23: #{query_encoder_forward.1} parent=0 // pred_check_branch
    %23 = sbr.rel (0) target = $region25
  $region24: #{query_encoder_forward.1} parent=0 // pred_region
    _
  $region25: #{query_encoder_forward.1} parent=0 // pred_fallthru
    _
  // Predicated region
  $region26: #{query_encoder_forward.1} parent=0 // pred_check
    _
  $region27: #{query_encoder_forward.1} parent=0 // pred_check_branch
    %25 = sbr.rel (0) target = $region29
  $region28: #{query_encoder_forward.1} parent=0 // pred_region
    _
  $region29: #{query_encoder_forward.1} parent=0 // pred_fallthru
    _
  %v26 = vld [vmem:[%s1] sm:$0xff]
  %v27 = vld [vmem:[%s1 + $0x8] sm:$0xff]
  %v28 = vld [vmem:[%s0] sm:$0xff]
  %v29 = vld [vmem:[%s0 + $0x8] sm:$0xff]
  %v30 = vld [vmem:[%s0 + $0x10] sm:$0xff]
  %v31 = vld [vmem:[%s0 + $0x18] sm:$0xff]
  %v32 = vld [vmem:[%s0 + $0x20] sm:$0xff]
  %v33 = vld [vmem:[%s0 + $0x28] sm:$0xff]
  %v34 = vld [vmem:[%s0 + $0x30] sm:$0xff]
  %v35 = vld [vmem:[%s0 + $0x38] sm:$0xff]
  %v36 = vld [vmem:[%s0 + $0x40] sm:$0xff]
  %v37 = vld [vmem:[%s0 + $0x48] sm:$0xff]
  %v38 = vld [vmem:[%s0 + $0x50] sm:$0xff]
  %v39 = vld [vmem:[%s0 + $0x58] sm:$0xff]
  %v40 = vld [vmem:[%s0 + $0x60] sm:$0xff]
  %v41 = vld [vmem:[%s0 + $0x68] sm:$0xff]
  %v42 = vld [vmem:[%s0 + $0x70] sm:$0xff]
  %v43 = vld [vmem:[%s0 + $0x78] sm:$0xff]
  %v44 = vld [vmem:[%s2] sm:$0xff]
  %v45 = vld [vmem:[%s2 + $0x8] sm:$0xff]
  %47 = vset.pattern.permute.xlu0 0
  %48 = vperm.xlu0 %47, %v44
  %v49 = vpop.permute.xlu0 %48
  %52 = vset.pattern.permute.xlu0 0
  %53 = vperm.xlu0 %52, %v45
  %v54 = vpop.permute.xlu0 %53
  %vm56 = vcmask 261120
  %v58 = vsel %vm56, %v26, 0
  %v61 = vsel %vm56, %v27, 0
  %v64 = vsel %vm56, %v28, 0
  %v67 = vsel %vm56, %v29, 0
  %v70 = vsel %vm56, %v30, 0
  %v73 = vsel %vm56, %v31, 0
  %v76 = vsel %vm56, %v32, 0
  %v79 = vsel %vm56, %v33, 0
  %v82 = vsel %vm56, %v34, 0
  %v85 = vsel %vm56, %v35, 0
  %v88 = vsel %vm56, %v36, 0
  %v91 = vsel %vm56, %v37, 0
  %v94 = vsel %vm56, %v38, 0
  %v97 = vsel %vm56, %v39, 0
  %v100 = vsel %vm56, %v40, 0
  %v103 = vsel %vm56, %v41, 0
  %v106 = vsel %vm56, %v42, 0
  %v109 = vsel %vm56, %v43, 0
  %111 = vmatprep.subr.mxu0 0.0
  %112 = vmatpush1.xpose.msra.mxu0 %v64
  %113 = vmatprep.subr.mxu0 0.0
  %114 = vmatpush1.xpose.msra.mxu0 %v67
  %115 = vmatprep.subr.mxu0 0.0
  %116 = vmatpush1.xpose.msra.mxu0 %v70
  %117 = vmatprep.subr.mxu0 0.0
  %118 = vmatpush1.xpose.msra.mxu0 %v73
  %119 = vmatprep.subr.mxu0 0.0
  %120 = vmatpush1.xpose.msra.mxu0 %v76
  %121 = vmatprep.subr.mxu0 0.0
  %122 = vmatpush1.xpose.msra.mxu0 %v79
  %123 = vmatprep.subr.mxu0 0.0
  %124 = vmatpush1.xpose.msra.mxu0 %v82
  %125 = vmatprep.subr.mxu0 0.0
  %126 = vmatpush1.xpose.msra.mxu0 %v85
  %127 = vmatprep.subr.mxu0 0.0
  %128 = vmatpush1.xpose.msra.mxu0 %v88
  %129 = vmatprep.subr.mxu0 0.0
  %130 = vmatpush1.xpose.msra.mxu0 %v91
  %131 = vmatprep.subr.mxu0 0.0
  %132 = vmatpush1.xpose.msra.mxu0 %v94
  %133 = vmatprep.subr.mxu0 0.0
  %134 = vmatpush1.xpose.msra.mxu0 %v97
  %135 = vmatprep.subr.mxu0 0.0
  %136 = vmatpush1.xpose.msra.mxu0 %v100
  %137 = vmatprep.subr.mxu0 0.0
  %138 = vmatpush1.xpose.msra.mxu0 %v103
  %139 = vmatprep.subr.mxu0 0.0
  %140 = vmatpush1.xpose.msra.mxu0 %v106
  %141 = vmatprep.subr.mxu0 0.0
  %142 = vmatpush1.xpose.msra.mxu0 %v109
  %143 = vmatprep.subr.mxu0 0.0
  %144 = vmatpush1.xpose.msra.mxu0 0.0
  %145 = vmatprep.subr.mxu0 0.0
  %146 = vmatpush1.xpose.msra.mxu0 0.0
  %147 = vmatprep.subr.mxu0 0.0
  %148 = vmatpush1.xpose.msra.mxu0 0.0
  %149 = vmatprep.subr.mxu0 0.0
  %150 = vmatpush1.xpose.msra.mxu0 0.0
  %151 = vmatprep.subr.mxu0 0.0
  %152 = vmatpush1.xpose.msra.mxu0 0.0
  %153 = vmatprep.subr.mxu0 0.0
  %154 = vmatpush1.xpose.msra.mxu0 0.0
  %155 = vmatprep.subr.mxu0 0.0
  %156 = vmatpush1.xpose.msra.mxu0 0.0
  %157 = vmatprep.subr.mxu0 0.0
  %158 = vmatpush1.xpose.msra.mxu0 0.0
  %159 = vmatprep.subr.mxu0 0.0
  %160 = vmatpush1.xpose.msra.mxu0 0.0
  %161 = vmatprep.subr.mxu0 0.0
  %162 = vmatpush1.xpose.msra.mxu0 0.0
  %163 = vmatprep.subr.mxu0 0.0
  %164 = vmatpush1.xpose.msra.mxu0 0.0
  %165 = vmatprep.subr.mxu0 0.0
  %166 = vmatpush1.xpose.msra.mxu0 0.0
  %167 = vmatprep.subr.mxu0 0.0
  %168 = vmatpush1.xpose.msra.mxu0 0.0
  %169 = vmatprep.subr.mxu0 0.0
  %170 = vmatpush1.xpose.msra.mxu0 0.0
  %171 = vmatprep.subr.mxu0 0.0
  %172 = vmatpush1.xpose.msra.mxu0 0.0
  %173 = vmatprep.subr.mxu0 0.0
  %174 = vmatpush1.xpose.msra.mxu0 0.0
  %175 = vmatprep.mubr.f32.mxu0 0.0
  %176 = vmatmul.mubr.f32.gmra.mrb[0].mxu0 %v58
  %v177 = vpop.f32.mrb[0].mxu0
  %v178 = vadd.f32 %v49, %v177
  %v179 = vpop.f32.mrb[0].mxu0
  %180 = vmatprep.mubr.f32.mxu0 0.0
  %181 = vmatmul.mubr.f32.gmra.mrb[0].mxu0 %v61
  %v182 = vpop.f32.mrb[0].mxu0
  %v183 = vadd.f32 %v54, %v182
  %v184 = vpop.f32.mrb[0].mxu0
  %185 = vdwg.mxu0
  %v186 = vmax.f32 %v178, 0.0
  %v187 = vmax.f32 %v183, 0.0
  %v188 = vld [vmem:[%s3] sm:$0xff]
  %v189 = vld [vmem:[%s3 + $0x8] sm:$0x3]
  %v190 = vld [vmem:[%s4] sm:$0xff]
  %v191 = vld [vmem:[%s4 + $0x8] sm:$0x3]
  %193 = vset.pattern.permute.xlu0 0
  %194 = vperm.xlu0 %193, %v190
  %v195 = vpop.permute.xlu0 %194
  %198 = vset.pattern.permute.xlu0 0
  %199 = vperm.xlu0 %198, %v191
  %v200 = vpop.permute.xlu0 %199
  %vm202 = vcmask 130048
  %v204 = vsel %vm202, %v188, 0
  %v207 = vsel %vm202, %v189, 0
  %209 = vmatprep.subr.mxu0 0.0
  %210 = vmatpush1.msra.mxu0 %v186
  %211 = vmatprep.subr.mxu0 0.0
  %212 = vmatpush1.msra.mxu0 %v187
  %213 = vmatprep.subr.mxu0 0.0
  %214 = vmatpush1.msra.mxu0 0.0
  %215 = vmatprep.subr.mxu0 0.0
  %216 = vmatpush1.msra.mxu0 0.0
  %217 = vmatprep.subr.mxu0 0.0
  %218 = vmatpush1.msra.mxu0 0.0
  %219 = vmatprep.subr.mxu0 0.0
  %220 = vmatpush1.msra.mxu0 0.0
  %221 = vmatprep.subr.mxu0 0.0
  %222 = vmatpush1.msra.mxu0 0.0
  %223 = vmatprep.subr.mxu0 0.0
  %224 = vmatpush1.msra.mxu0 0.0
  %225 = vmatprep.subr.mxu0 0.0
  %226 = vmatpush1.msra.mxu0 0.0
  %227 = vmatprep.subr.mxu0 0.0
  %228 = vmatpush1.msra.mxu0 0.0
  %229 = vmatprep.subr.mxu0 0.0
  %230 = vmatpush1.msra.mxu0 0.0
  %231 = vmatprep.subr.mxu0 0.0
  %232 = vmatpush1.msra.mxu0 0.0
  %233 = vmatprep.subr.mxu0 0.0
  %234 = vmatpush1.msra.mxu0 0.0
  %235 = vmatprep.subr.mxu0 0.0
  %236 = vmatpush1.msra.mxu0 0.0
  %237 = vmatprep.subr.mxu0 0.0
  %238 = vmatpush1.msra.mxu0 0.0
  %239 = vmatprep.subr.mxu0 0.0
  %240 = vmatpush1.msra.mxu0 0.0
  %241 = vmatprep.subr.mxu0 0.0
  %242 = vmatpush1.msra.mxu0 0.0
  %243 = vmatprep.subr.mxu0 0.0
  %244 = vmatpush1.msra.mxu0 0.0
  %245 = vmatprep.subr.mxu0 0.0
  %246 = vmatpush1.msra.mxu0 0.0
  %247 = vmatprep.subr.mxu0 0.0
  %248 = vmatpush1.msra.mxu0 0.0
  %249 = vmatprep.subr.mxu0 0.0
  %250 = vmatpush1.msra.mxu0 0.0
  %251 = vmatprep.subr.mxu0 0.0
  %252 = vmatpush1.msra.mxu0 0.0
  %253 = vmatprep.subr.mxu0 0.0
  %254 = vmatpush1.msra.mxu0 0.0
  %255 = vmatprep.subr.mxu0 0.0
  %256 = vmatpush1.msra.mxu0 0.0
  %257 = vmatprep.subr.mxu0 0.0
  %258 = vmatpush1.msra.mxu0 0.0
  %259 = vmatprep.subr.mxu0 0.0
  %260 = vmatpush1.msra.mxu0 0.0
  %261 = vmatprep.subr.mxu0 0.0
  %262 = vmatpush1.msra.mxu0 0.0
  %263 = vmatprep.subr.mxu0 0.0
  %264 = vmatpush1.msra.mxu0 0.0
  %265 = vmatprep.subr.mxu0 0.0
  %266 = vmatpush1.msra.mxu0 0.0
  %267 = vmatprep.subr.mxu0 0.0
  %268 = vmatpush1.msra.mxu0 0.0
  %269 = vmatprep.subr.mxu0 0.0
  %270 = vmatpush1.msra.mxu0 0.0
  %271 = vmatprep.subr.mxu0 0.0
  %272 = vmatpush1.msra.mxu0 0.0
  %273 = vmatprep.mubr.f32.mxu0 0.0
  %274 = vmatmul.mubr.f32.gmra.mrb[0].mxu0 %v204
  %v275 = vpop.f32.mrb[0].mxu0
  %v276 = vadd.f32 %v195, %v275
  %v277 = vpop.f32.mrb[0].mxu0
  %278 = vmatprep.mubr.f32.mxu0 0.0
  %279 = vmatmul.mubr.f32.gmra.mrb[0].mxu0 %v207
  %v280 = vpop.f32.mrb[0].mxu0
  %v281 = vadd.f32 %v200, %v280
  %v282 = vpop.f32.mrb[0].mxu0
  %283 = vdwg.mxu0
  %v284 = vmax.f32 %v276, 0.0
  %v285 = vmax.f32 %v281, 0.0
  %v286 = vld [vmem:[%s5] sm:$0xff]
  %v287 = vld [vmem:[%s6] sm:$0xff]
  %289 = vset.pattern.permute.xlu0 0
  %290 = vperm.xlu0 %289, %v287
  %v291 = vpop.permute.xlu0 %290
  %vm293 = vcmask 80896
  %v295 = vsel %vm293, %v286, 0
  %vm297 = vcmask 1041408
  %v299 = vsel %vm297, %v285, 0
  %301 = vmatprep.subr.mxu0 0.0
  %302 = vmatpush1.msra.mxu0 %v284
  %303 = vmatprep.subr.mxu0 0.0
  %304 = vmatpush1.msra.mxu0 %v299
  %305 = vmatprep.subr.mxu0 0.0
  %306 = vmatpush1.msra.mxu0 0.0
  %307 = vmatprep.subr.mxu0 0.0
  %308 = vmatpush1.msra.mxu0 0.0
  %309 = vmatprep.subr.mxu0 0.0
  %310 = vmatpush1.msra.mxu0 0.0
  %311 = vmatprep.subr.mxu0 0.0
  %312 = vmatpush1.msra.mxu0 0.0
  %313 = vmatprep.subr.mxu0 0.0
  %314 = vmatpush1.msra.mxu0 0.0
  %315 = vmatprep.subr.mxu0 0.0
  %316 = vmatpush1.msra.mxu0 0.0
  %317 = vmatprep.subr.mxu0 0.0
  %318 = vmatpush1.msra.mxu0 0.0
  %319 = vmatprep.subr.mxu0 0.0
  %320 = vmatpush1.msra.mxu0 0.0
  %321 = vmatprep.subr.mxu0 0.0
  %322 = vmatpush1.msra.mxu0 0.0
  %323 = vmatprep.subr.mxu0 0.0
  %324 = vmatpush1.msra.mxu0 0.0
  %325 = vmatprep.subr.mxu0 0.0
  %326 = vmatpush1.msra.mxu0 0.0
  %327 = vmatprep.subr.mxu0 0.0
  %328 = vmatpush1.msra.mxu0 0.0
  %329 = vmatprep.subr.mxu0 0.0
  %330 = vmatpush1.msra.mxu0 0.0
  %331 = vmatprep.subr.mxu0 0.0
  %332 = vmatpush1.msra.mxu0 0.0
  %333 = vmatprep.subr.mxu0 0.0
  %334 = vmatpush1.msra.mxu0 0.0
  %335 = vmatprep.subr.mxu0 0.0
  %336 = vmatpush1.msra.mxu0 0.0
  %337 = vmatprep.subr.mxu0 0.0
  %338 = vmatpush1.msra.mxu0 0.0
  %339 = vmatprep.subr.mxu0 0.0
  %340 = vmatpush1.msra.mxu0 0.0
  %341 = vmatprep.subr.mxu0 0.0
  %342 = vmatpush1.msra.mxu0 0.0
  %343 = vmatprep.subr.mxu0 0.0
  %344 = vmatpush1.msra.mxu0 0.0
  %345 = vmatprep.subr.mxu0 0.0
  %346 = vmatpush1.msra.mxu0 0.0
  %347 = vmatprep.subr.mxu0 0.0
  %348 = vmatpush1.msra.mxu0 0.0
  %349 = vmatprep.subr.mxu0 0.0
  %350 = vmatpush1.msra.mxu0 0.0
  %351 = vmatprep.subr.mxu0 0.0
  %352 = vmatpush1.msra.mxu0 0.0
  %353 = vmatprep.subr.mxu0 0.0
  %354 = vmatpush1.msra.mxu0 0.0
  %355 = vmatprep.subr.mxu0 0.0
  %356 = vmatpush1.msra.mxu0 0.0
  %357 = vmatprep.subr.mxu0 0.0
  %358 = vmatpush1.msra.mxu0 0.0
  %359 = vmatprep.subr.mxu0 0.0
  %360 = vmatpush1.msra.mxu0 0.0
  %361 = vmatprep.subr.mxu0 0.0
  %362 = vmatpush1.msra.mxu0 0.0
  %363 = vmatprep.subr.mxu0 0.0
  %364 = vmatpush1.msra.mxu0 0.0
  %365 = vmatprep.mubr.f32.mxu0 0.0
  %366 = vmatmul.mubr.f32.gmra.mrb[0].mxu0 %v295
  %v367 = vpop.f32.mrb[0].mxu0
  %v368 = vadd.f32 %v291, %v367
  %v369 = vpop.f32.mrb[0].mxu0
  %370 = vdwg.mxu0
  %v371 = vmax.f32 %v368, 0.0
  %372 = vst [vmem:[%s7] sm:$0xff] %v371
  // Predicated region
  $region30: #{query_encoder_forward.1} parent=0 // pred_check
    _
  $region31: #{query_encoder_forward.1} parent=0 // pred_check_branch
    %374 = sbr.rel (0) target = $region33
  $region32: #{query_encoder_forward.1} parent=0 // pred_region
    _
  $region33: #{query_encoder_forward.1} parent=0 // pred_fallthru
    _
  // Predicated region
  $region34: #{query_encoder_forward.1} parent=0 // pred_check
    _
  $region35: #{query_encoder_forward.1} parent=0 // pred_check_branch
    %376 = sbr.rel (0) target = $region37
  $region36: #{query_encoder_forward.1} parent=0 // pred_region
    _
  $region37: #{query_encoder_forward.1} parent=0 // pred_fallthru
    _

</llo_original>
